<compile_context>
chip_gen: v7x
topology: tpu7x:2x2x1
jax: 0.10.0
libtpu: 0.0.40
codegen_flags: <defaults>
</compile_context>

<pallas_src>
import math

import jax
import jax.numpy as jnp
from jax.experimental import pallas as pl
from jax.experimental.pallas import tpu as pltpu

_LANE = 128
_PI = math.pi

# Byte-based block sizing: ~4 MiB blocks sit at the measured ~86% HBM-roofline
# knee; never shrink below ~1 MiB just to manufacture extra grid steps.
_TARGET_BLOCK_BYTES = 4 << 20
_MIN_BLOCK_BYTES = 1 << 20
# 4 MiB blocks * (2 in + 2 out double-buffers) = 16 MiB == v5e's default scoped
# VMEM limit; request 32 MiB explicitly (also the v6e/v7x default, fits all).
_VMEM_LIMIT_BYTES = 32 << 20


def _sinc_kernel(x_ref, o_ref):
    """Elementwise sinc on one VMEM block (works for 1-D or 2-D blocks).

    NOTE: a ragged final block is computed over stale/garbage lanes and the
    writeback is masked by Pallas.  That is only benign because this body is
    purely elementwise -- do NOT add block-level reductions here.
    """
    z = x_ref[...].astype(jnp.float32)
    pz = jnp.float32(_PI) * z
    # Safe denominator: the z == 0 lanes never see 0/0 (and flush-to-zero of a
    # subnormal pi*z cannot produce a NaN that the select would miss).
    den = jnp.where(z == 0.0, jnp.float32(1.0), pz)
    s = jnp.sin(pz)
    if jnp.dtype(o_ref.dtype) == jnp.float32:
        # Exact divide for f32 storage (keeps results within ~1e-6 of ref).
        r = s / den
    else:
        # bf16/f16 storage: approx reciprocal runs on the otherwise-idle EUP
        # slot and drops the Newton-refined f32 divide from the VALU slot.
        # rel-err ~1e-4 is far below the bf16 output ULP.
        r = s * pl.reciprocal(den, approx=True)
    out = jnp.where(z == 0.0, jnp.float32(1.0), r)
    o_ref[...] = out.astype(o_ref.dtype)


def _pick_block(n_major: int, major_bytes: int, align: int) -> int:
    """Block extent along the single grid axis.

    - targets ~_TARGET_BLOCK_BYTES per block (byte-based, dtype-agnostic),
    - never shrinks a block below ~_MIN_BLOCK_BYTES just to add grid steps
      (2-4 steps already pipeline; the old >=8-step clamp only shrank blocks),
    - prefers an even grid length so v7x megacore splits the axis evenly,
    - tensors <= 2 MiB get a single full-extent block (the (8,128)
      divisibility constraint is waived for full-extent block dims).
    """
    if n_major * major_bytes <= 2 * _MIN_BLOCK_BYTES:
        return n_major
    target = max(align, (_TARGET_BLOCK_BYTES // major_bytes) // align * align)
    min_blk = max(align, (_MIN_BLOCK_BYTES // major_bytes) // align * align)
    blk = min(target, n_major)
    steps = pl.cdiv(n_major, blk)
    if steps % 2 == 1:
        cand = pl.cdiv(n_major, steps + 1)
        cand = ((cand + align - 1) // align) * align
        if cand >= min_blk:
            blk = cand
    return blk


def _run_2d(x2d: jax.Array, tile_rows: int) -> jax.Array:
    rows, lane = x2d.shape
    return pl.pallas_call(
        _sinc_kernel,
        out_shape=jax.ShapeDtypeStruct((rows, lane), x2d.dtype),
        grid=(pl.cdiv(rows, tile_rows),),
        in_specs=[pl.BlockSpec((tile_rows, lane), lambda i: (i, 0))],
        out_specs=pl.BlockSpec((tile_rows, lane), lambda i: (i, 0)),
        compiler_params=pltpu.CompilerParams(
            dimension_semantics=("parallel",),
            vmem_limit_bytes=_VMEM_LIMIT_BYTES,
        ),
    )(x2d)


def _run_1d(x1d: jax.Array, block: int) -> jax.Array:
    n = x1d.shape[0]
    return pl.pallas_call(
        _sinc_kernel,
        out_shape=jax.ShapeDtypeStruct((n,), x1d.dtype),
        grid=(pl.cdiv(n, block),),
        in_specs=[pl.BlockSpec((block,), lambda i: (i,))],
        out_specs=pl.BlockSpec((block,), lambda i: (i,)),
        compiler_params=pltpu.CompilerParams(
            dimension_semantics=("parallel",),
            vmem_limit_bytes=_VMEM_LIMIT_BYTES,
        ),
    )(x1d)


def sinc(x: jax.Array) -> jax.Array:
    """Applies sin(pi*z)/(pi*z) elementwise (1 at z == 0). Same shape/dtype.

    The PyTorch module's `inplace` flag is a no-op there as well, so it is
    intentionally not exposed here.
    """
    orig_shape = x.shape
    n = x.size
    if n == 0:
        return x
    dtype_bytes = jnp.dtype(x.dtype).itemsize
    sub = max(8, 32 // dtype_bytes)  # sublane multiple: 8 f32, 16 bf16, 32 int8

    if n % _LANE == 0:
        # Fast path (covers NCHW-ish sizes): free reshape to a lane-dense
        # (rows, 128) slab; no pad, no extra HBM pass.
        rows = n // _LANE
        tile_rows = _pick_block(rows, _LANE * dtype_bytes, sub)
        out = _run_2d(x.reshape(rows, _LANE), tile_rows)
        return out.reshape(orig_shape)

    # Ragged sizes (n % 128 != 0): 1-D blocked kernel over the flat array.
    # No zero-pad / concatenate / trailing-slice copies -- Pallas masks the
    # ragged final block, so HBM traffic stays 1 read + 1 write of the tensor.
    flat = x.reshape(-1)
    block = _pick_block(n, dtype_bytes, sub * _LANE)
    out = _run_1d(flat, block)
    return out.reshape(orig_shape)


def _sinc_ref(x):
    """Pure-JAX reference (computed in f32)."""
    xf = x.astype(jnp.float32)
    pz = jnp.pi * xf
    return jnp.where(xf == 0, jnp.float32(1.0), jnp.sin(pz) / pz)


if __name__ == "__main__":
    key = jax.random.PRNGKey(0)
    k1, k2, k3, k4 = jax.random.split(key, 4)

    # 1) f32 NCHW fast path (2*4*16*16 = 2048 elements, divisible by 128).
    x = jax.random.normal(k1, (2, 4, 16, 16), dtype=jnp.float32) * 3.0
    x = x.at[0, 0, 0, :4].set(0.0)  # exercise the z == 0 branch
    y = sinc(x)
    jax.block_until_ready(y)
    assert y.shape == x.shape and y.dtype == x.dtype
    assert float(jnp.max(jnp.abs(y - _sinc_ref(x).astype(x.dtype)))) < 1e-6

    # 2) Ragged size (3*5*7 = 105): 1-D path, single full-extent block.
    x2 = jax.random.normal(k2, (3, 5, 7), dtype=jnp.float32)
    y2 = sinc(x2)
    jax.block_until_ready(y2)
    assert y2.shape == x2.shape and y2.dtype == x2.dtype
    assert float(jnp.max(jnp.abs(y2 - _sinc_ref(x2).astype(x2.dtype)))) < 1e-6

    # 3) bf16 input: storage stays bf16 end-to-end; approx-reciprocal branch.
    xb = (jax.random.normal(k3, (2, 4, 16, 16), dtype=jnp.float32) * 3.0
          ).astype(jnp.bfloat16)
    xb = xb.at[1, 2, 3, :8].set(0.0)
    yb = sinc(xb)
    jax.block_until_ready(yb)
    assert yb.shape == xb.shape and yb.dtype == jnp.bfloat16
    err_b = float(jnp.max(jnp.abs(yb.astype(jnp.float32) - _sinc_ref(xb))))
    assert err_b < 2e-2  # bf16 output ULP dominates

    # 4) Larger f32 tensor (4 MiB) -> 2 even grid steps (multi-block path).
    x4 = jax.random.normal(k4, (4, 8, 256, 128), dtype=jnp.float32)
    y4 = sinc(x4)
    jax.block_until_ready(y4)
    assert y4.shape == x4.shape and y4.dtype == x4.dtype
    assert float(jnp.max(jnp.abs(y4 - _sinc_ref(x4).astype(x4.dtype)))) < 1e-5

    print("KERNEL_OK")
</pallas_src>

<mosaic_0001>
module attributes {stable_mosaic.version = 11 : i64} {
  func.func @_sinc_kernel(%arg0: i32, %arg1: memref<16x128xf32, #tpu.memory_space<vmem>>, %arg2: memref<16x128xf32, #tpu.memory_space<vmem>>) attributes {dimension_semantics = [#tpu.dimension_semantics<parallel>], iteration_bounds = array<i64: 1>, scalar_prefetch = 0 : i64, scratch_operands = 0 : i64, tpu.core_type = #tpu.core_type<tc>, window_params = [{transform_indices = @transform_0, window_bounds = array<i64: 16, 128>}, {transform_indices = @transform_1, window_bounds = array<i64: 16, 128>}]} {
    %c0 = arith.constant 0 : index
    %c0_0 = arith.constant 0 : index
    %0 = vector.load %arg1[%c0, %c0_0] : memref<16x128xf32, #tpu.memory_space<vmem>>, vector<16x128xf32>
    %cst = arith.constant 3.14159274 : f32
    %1 = vector.broadcast %cst : f32 to vector<16x128xf32>
    %2 = arith.mulf %1, %0 : vector<16x128xf32>
    %cst_1 = arith.constant 0.000000e+00 : f32
    %3 = vector.broadcast %cst_1 : f32 to vector<16x128xf32>
    %4 = arith.cmpf oeq, %0, %3 : vector<16x128xf32>
    %cst_2 = arith.constant 1.000000e+00 : f32
    %5 = vector.broadcast %cst_2 : f32 to vector<16x128xf32>
    %6 = arith.select %4, %5, %2 : vector<16x128xi1>, vector<16x128xf32>
    %7 = math.sin %2 : vector<16x128xf32>
    %8 = arith.divf %7, %6 : vector<16x128xf32>
    %cst_3 = arith.constant 0.000000e+00 : f32
    %9 = vector.broadcast %cst_3 : f32 to vector<16x128xf32>
    %10 = arith.cmpf oeq, %0, %9 : vector<16x128xf32>
    %cst_4 = arith.constant 1.000000e+00 : f32
    %11 = vector.broadcast %cst_4 : f32 to vector<16x128xf32>
    %12 = arith.select %10, %11, %8 : vector<16x128xi1>, vector<16x128xf32>
    %c0_5 = arith.constant 0 : index
    %c0_6 = arith.constant 0 : index
    %13 = vector.load %arg2[%c0_5, %c0_6] : memref<16x128xf32, #tpu.memory_space<vmem>>, vector<16x128xf32>
    tpu.vector_store %arg2[%c0_5, %c0_6], %12 {strides = array<i32>} : memref<16x128xf32, #tpu.memory_space<vmem>>, vector<16x128xf32>,
    return
  }
  func.func @transform_0(%arg0: i32) -> (i32, i32) {
    %c0_i32 = arith.constant 0 : i32
    %c0_i32_0 = arith.constant 0 : i32
    return %arg0, %c0_i32 : i32, i32
  }
  func.func @transform_1(%arg0: i32) -> (i32, i32) {
    %c0_i32 = arith.constant 0 : i32
    %c0_i32_0 = arith.constant 0 : i32
    return %arg0, %c0_i32 : i32, i32
  }
}

</mosaic_0001>

<llo_original>
// kernel: tpu_custom_call.1
$region0: #{tpu_custom_call.1}
  #allocation0 [shape = 'u32[]', space=smem, size = 0x4, offset = 0x4, fixed_abs, tag = 'smem constant byte address 0x4 - core index']
  #allocation1 [shape = 'u32[144,128]{1,0:T(1,128)}', space=vmem, size = 0x12000, scoped, tag = 'internal scratch']
  %s0 = inlined_call_operand.hbm [shape: f32[16,128], index: 0, kind: input, shape index: {}]
  %s1 = inlined_call_operand.hbm [shape: f32[16,128], index: 1, kind: output, shape index: {}]
  %s2 = sld [smem:[#allocation0]]
  $region18: #{tpu_custom_call.1} parent=0
    _
  %s4 = ssub.s32 1, %s2
  %s5 = scalar_select 0, %s4, %s2
  $region1: #{tpu_custom_call.1} parent=0
    #allocation2 [shape = 'u8[8192]{0}', space=vmem, size = 0x2000, scoped, tag = 'input window, operand 0, single buffered']
    #allocation3 [shape = 's32[1]{0}', space=sflag, size = 0x4, scoped, tag = 'scoped memory for tpu_custom_call.1']
    #allocation4 [shape = 's32[1]{0}', space=sflag, size = 0x4, scoped, tag = 'scoped memory for tpu_custom_call.1']
    #allocation5 [shape = 'u8[8192]{0}', space=vmem, size = 0x2000, scoped, tag = 'output window, operand 0, single buffered']
    %6 = vsyncpa [#allocation3], 0
    %7 = vsyncpa [#allocation4], 0
    // Predicated region
    $region2: #{tpu_custom_call.1} parent=1 // pred_check
      _
    $region3: #{tpu_custom_call.1} parent=1 // pred_check_branch
      %9 = sbr.rel (0) target = $region5
    $region4: #{tpu_custom_call.1} parent=1 // pred_region
      %s11 = ssub.s32 256, 256
      %12 = vsyncadd [#allocation3], %s11
      %s13 = sshll.u32 [#allocation2], 4
      %s14 = int_to_ptr.vmem [resolvable:$true] %s13
      %19 = dma.hbm_to_vmem [thread:$0]  %s0, 256, %s14, [#allocation3], 128, 128, 8
    $region5: #{tpu_custom_call.1} parent=1 // pred_fallthru
      _
    // Predicated region
    $region6: #{tpu_custom_call.1} parent=1 // pred_check
      _
    $region7: #{tpu_custom_call.1} parent=1 // pred_check_branch
      %21 = sbr.rel (0) target = $region9
    $region8: #{tpu_custom_call.1} parent=1 // pred_region
      %22 = dma.done [#allocation3], 256
    $region9: #{tpu_custom_call.1} parent=1 // pred_fallthru
      _
    %v23 = vld [vmem:[#allocation2] sm:$0xff]
    %v24 = vld [vmem:[#allocation2 + $0x8] sm:$0xff]
    %v25 = vmul.f32 %v23, 3.1415927
    %v26 = vmul.f32 %v24, 3.1415927
    %vm27 = vcmp.eq.f32.partialorder %v23, 0.0
    %vm28 = vcmp.eq.f32.partialorder %v24, 0.0
    %v29 = vsel %vm27, 1.0, %v25
    %v30 = vsel %vm28, 1.0, %v26
    %v31 = vand.u32 2147483647, %v25
    %vm32 = vcmp.le.f32.partialorder %v31, 0.7853982
    %vm33 = vcmp.lt.s32.totalorder %v25, 0
    %v34 = vand.u32 %v25, 2139095040
    %v35 = vshrl.u32 %v34, 23
    %v36 = vsub.s32 %v35, 127
    %v37 = vand.u32 2147483647, %v25
    %v38 = vand.u32 %v37, 8388607
    %v39 = vor.u32 %v38, 8388608
    %v40 = vsub.s32 0, %v39
    %v41 = vadd.s32 %v36, 1
    %vm42 = vcmp.gt.s32.totalorder %v41, 0
    %v43 = vsel %vm42, %v41, 0
    %v44 = vshrl.u32 %v43, 5
    %v45 = vand.u32 %v43, 31
    %v46 = vsub.s32 32, %v45
    %v47 = vshrl.u32 683565275, %v46
    %v48 = vshll.u32 683565275, %v45
    %v49 = vshrl.u32 2475754826, %v46
    %v50 = vor.u32 %v48, %v49
    %v51 = vshll.u32 2475754826, %v45
    %v52 = vshrl.u32 2131351028, %v46
    %v53 = vor.u32 %v51, %v52
    %v54 = vshll.u32 2131351028, %v45
    %v55 = vshrl.u32 2102212464, %v46
    %v56 = vor.u32 %v54, %v55
    %v57 = vshll.u32 2102212464, %v45
    %v58 = vshrl.u32 920167782, %v46
    %v59 = vor.u32 %v57, %v58
    %v60 = vshll.u32 920167782, %v45
    %v61 = vshrl.u32 1326507024, %v46
    %v62 = vor.u32 %v60, %v61
    %vm63 = vcmp.lt.s32.totalorder %v44, 1
    %vm64 = vcmp.lt.s32.totalorder %v44, 2
    %vm65 = vcmp.lt.s32.totalorder %v44, 3
    %vm66 = vcmp.lt.s32.totalorder %v44, 4
    %v67 = vsel %vm63, %v47, %v50
    %v68 = vsel %vm66, %v56, 2102212464
    %v69 = vsel %vm65, %v53, %v68
    %v70 = vsel %vm64, %v67, %v69
    %v71 = vsel %vm63, %v50, %v53
    %v72 = vsel %vm66, %v59, 920167782
    %v73 = vsel %vm65, %v56, %v72
    %v74 = vsel %vm64, %v71, %v73
    %v75 = vsel %vm63, %v53, %v56
    %v76 = vsel %vm66, %v62, 1326507024
    %v77 = vsel %vm65, %v59, %v76
    %v78 = vsel %vm64, %v75, %v77
    %v79 = vshll.u32 %v39, 8
    %v80 = vmul.u32.u64.compose %v79, %v78
    %v81 = vextract.low.u32 %v80
    %v82 = vextract.high.u32 %v80
    %v83 = vmul.u32.u64.compose %v79, %v74
    %v84 = vextract.low.u32 %v83
    %v85 = vextract.high.u32 %v83
    %v86 = vmul.u32 %v79, %v70
    %v87 = vadd.s32 %v82, %v84
    %vm88 = vc.u32 %v82, %v84
    %v89 = vadd.s32 %v85, 1
    %v90 = vsel %vm88, %v89, %v85
    %v91 = vadd.s32 %v86, %v90
    %v92 = vadd.s32 %v91, 536870912
    %v93 = vshrl.u32 %v92, 30
    %v94 = vshll.u32 %v93, 30
    %v95 = vsub.s32 %v91, %v94
    %vm96 = vcmp.lt.s32.totalorder %v95, 0
    %v97 = vsub.s32 0, %v95
    %v98 = vsel %vm96, %v97, %v95
    %v99 = vclz %v98
    %v100 = vsub.s32 %v99, 2
    %vm101 = vcmp.gt.s32.totalorder 0, %v100
    %v102 = vsel %vm101, 0, %v100
    %v103 = vsub.s32 32, %v102
    %v104 = vshll.u32 %v95, %v102
    %v105 = vshrl.u32 %v87, %v103
    %v106 = vor.u32 %v104, %v105
    %v107 = vsub.s32 4294967266, %v102
    %v108 = vadd.s32 %v107, 127
    %v109 = vshll.u32 %v108, 23
    %v110 = vor.u32 4788187, %v109
    %v111 = vand.u32 2147483647, %v110
    %v113 = vcvt.s32.f32 %v106
    %v114 = vmul.f32 %v113, %v111
    %v115 = vxor.u32 %v114, 2147483648
    %v116 = vsel %vm33, %v115, %v114
    %v117 = vsub.s32 4, %v93
    %v118 = vsel %vm33, %v117, %v93
    %v119 = vsel %vm32, %v25, %v116
    %v120 = vsel %vm32, 0, %v118
    %v121 = vcosq.f32.pop %v119
    %v122 = vsinq.f32.pop %v119
    %vm123 = vweird.f32 %v25
    %v124 = vadd.s32 %v120, 3
    %v125 = vand.u32 %v124, 3
    %vm126 = vcmp.lt.s32.totalorder %v125, 2
    %vm127 = vcmp.eq.s32.totalorder %v125, 0
    %v128 = vxor.u32 %v122, 2147483648
    %v129 = vsel %vm127, %v121, %v128
    %vm130 = vcmp.eq.s32.totalorder %v125, 2
    %v131 = vxor.u32 %v121, 2147483648
    %v132 = vsel %vm130, %v131, %v122
    %v133 = vsel %vm126, %v129, %v132
    %v134 = vsel %vm123, nan, %v133
    %v135 = vand.u32 2147483647, %v26
    %vm136 = vcmp.le.f32.partialorder %v135, 0.7853982
    %vm137 = vcmp.lt.s32.totalorder %v26, 0
    %v138 = vand.u32 %v26, 2139095040
    %v139 = vshrl.u32 %v138, 23
    %v140 = vsub.s32 %v139, 127
    %v141 = vand.u32 2147483647, %v26
    %v142 = vand.u32 %v141, 8388607
    %v143 = vor.u32 %v142, 8388608
    %v144 = vsub.s32 0, %v143
    %v145 = vadd.s32 %v140, 1
    %vm146 = vcmp.gt.s32.totalorder %v145, 0
    %v147 = vsel %vm146, %v145, 0
    %v148 = vshrl.u32 %v147, 5
    %v149 = vand.u32 %v147, 31
    %v150 = vsub.s32 32, %v149
    %v151 = vshrl.u32 683565275, %v150
    %v152 = vshll.u32 683565275, %v149
    %v153 = vshrl.u32 2475754826, %v150
    %v154 = vor.u32 %v152, %v153
    %v155 = vshll.u32 2475754826, %v149
    %v156 = vshrl.u32 2131351028, %v150
    %v157 = vor.u32 %v155, %v156
    %v158 = vshll.u32 2131351028, %v149
    %v159 = vshrl.u32 2102212464, %v150
    %v160 = vor.u32 %v158, %v159
    %v161 = vshll.u32 2102212464, %v149
    %v162 = vshrl.u32 920167782, %v150
    %v163 = vor.u32 %v161, %v162
    %v164 = vshll.u32 920167782, %v149
    %v165 = vshrl.u32 1326507024, %v150
    %v166 = vor.u32 %v164, %v165
    %vm167 = vcmp.lt.s32.totalorder %v148, 1
    %vm168 = vcmp.lt.s32.totalorder %v148, 2
    %vm169 = vcmp.lt.s32.totalorder %v148, 3
    %vm170 = vcmp.lt.s32.totalorder %v148, 4
    %v171 = vsel %vm167, %v151, %v154
    %v172 = vsel %vm170, %v160, 2102212464
    %v173 = vsel %vm169, %v157, %v172
    %v174 = vsel %vm168, %v171, %v173
    %v175 = vsel %vm167, %v154, %v157
    %v176 = vsel %vm170, %v163, 920167782
    %v177 = vsel %vm169, %v160, %v176
    %v178 = vsel %vm168, %v175, %v177
    %v179 = vsel %vm167, %v157, %v160
    %v180 = vsel %vm170, %v166, 1326507024
    %v181 = vsel %vm169, %v163, %v180
    %v182 = vsel %vm168, %v179, %v181
    %v183 = vshll.u32 %v143, 8
    %v184 = vmul.u32.u64.compose %v183, %v182
    %v185 = vextract.low.u32 %v184
    %v186 = vextract.high.u32 %v184
    %v187 = vmul.u32.u64.compose %v183, %v178
    %v188 = vextract.low.u32 %v187
    %v189 = vextract.high.u32 %v187
    %v190 = vmul.u32 %v183, %v174
    %v191 = vadd.s32 %v186, %v188
    %vm192 = vc.u32 %v186, %v188
    %v193 = vadd.s32 %v189, 1
    %v194 = vsel %vm192, %v193, %v189
    %v195 = vadd.s32 %v190, %v194
    %v196 = vadd.s32 %v195, 536870912
    %v197 = vshrl.u32 %v196, 30
    %v198 = vshll.u32 %v197, 30
    %v199 = vsub.s32 %v195, %v198
    %vm200 = vcmp.lt.s32.totalorder %v199, 0
    %v201 = vsub.s32 0, %v199
    %v202 = vsel %vm200, %v201, %v199
    %v203 = vclz %v202
    %v204 = vsub.s32 %v203, 2
    %vm205 = vcmp.gt.s32.totalorder 0, %v204
    %v206 = vsel %vm205, 0, %v204
    %v207 = vsub.s32 32, %v206
    %v208 = vshll.u32 %v199, %v206
    %v209 = vshrl.u32 %v191, %v207
    %v210 = vor.u32 %v208, %v209
    %v211 = vsub.s32 4294967266, %v206
    %v212 = vadd.s32 %v211, 127
    %v213 = vshll.u32 %v212, 23
    %v214 = vor.u32 4788187, %v213
    %v215 = vand.u32 2147483647, %v214
    %v217 = vcvt.s32.f32 %v210
    %v218 = vmul.f32 %v217, %v215
    %v219 = vxor.u32 %v218, 2147483648
    %v220 = vsel %vm137, %v219, %v218
    %v221 = vsub.s32 4, %v197
    %v222 = vsel %vm137, %v221, %v197
    %v223 = vsel %vm136, %v26, %v220
    %v224 = vsel %vm136, 0, %v222
    %v225 = vcosq.f32.pop %v223
    %v226 = vsinq.f32.pop %v223
    %vm227 = vweird.f32 %v26
    %v228 = vadd.s32 %v224, 3
    %v229 = vand.u32 %v228, 3
    %vm230 = vcmp.lt.s32.totalorder %v229, 2
    %vm231 = vcmp.eq.s32.totalorder %v229, 0
    %v232 = vxor.u32 %v226, 2147483648
    %v233 = vsel %vm231, %v225, %v232
    %vm234 = vcmp.eq.s32.totalorder %v229, 2
    %v235 = vxor.u32 %v225, 2147483648
    %v236 = vsel %vm234, %v235, %v226
    %v237 = vsel %vm230, %v233, %v236
    %v238 = vsel %vm227, nan, %v237
    %v239 = vrcp.pop %v29
    %v240 = vmul.f32 %v134, %v239
    %v241 = vrcp.pop %v30
    %v242 = vmul.f32 %v238, %v241
    %v243 = vsel %vm27, 1.0, %v240
    %v244 = vsel %vm28, 1.0, %v242
    %245 = vst [vmem:[#allocation5] sm:$0xff] %v243
    %246 = vst [vmem:[#allocation5 + $0x8] sm:$0xff] %v244
    // Predicated region
    $region10: #{tpu_custom_call.1} parent=1 // pred_check
      _
    $region11: #{tpu_custom_call.1} parent=1 // pred_check_branch
      %248 = sbr.rel (0) target = $region13
    $region12: #{tpu_custom_call.1} parent=1 // pred_region
      %s250 = ssub.s32 256, 256
      %251 = vsyncadd [#allocation4], %s250
      %s252 = sshll.u32 [#allocation5], 4
      %s253 = int_to_ptr.vmem [resolvable:$true] %s252
      %258 = dma.vmem_to_hbm [thread:$0]  %s253, 256, %s1, [#allocation4], 128, 128, 8
    $region13: #{tpu_custom_call.1} parent=1 // pred_fallthru
      _
    // Predicated region
    $region14: #{tpu_custom_call.1} parent=1 // pred_check
      _
    $region15: #{tpu_custom_call.1} parent=1 // pred_check_branch
      %260 = sbr.rel (0) target = $region17
    $region16: #{tpu_custom_call.1} parent=1 // pred_region
      %261 = dma.done [#allocation4], 256
    $region17: #{tpu_custom_call.1} parent=1 // pred_fallthru
      _
    %262 = vsyncpa [#allocation3], 1
    %263 = vsyncpa [#allocation4], 1

</llo_original>
